<compile_context>
chip_gen: v7x
topology: tpu7x:2x2x1
jax: 0.10.0
libtpu: 0.0.40
codegen_flags: <defaults>
</compile_context>

<pallas_src>
import functools

import jax
import jax.numpy as jnp
from jax.experimental import pallas as pl
from jax.experimental.pallas import tpu as pltpu

NUM_SPLITS = 3
ALPHA = 12.0
_LANE = 128


def _jsd_ce_kernel(logits_ref, target_ref, out_ref, pmix_ref, *, num_splits, alpha):
    """One row-tile of the JSD + CE loss.

    logits_ref: (num_splits, TR, Cp)  native dtype, Cp lane-dense
    target_ref: (TR, 1) int32         class indices for the clean (first) split
    out_ref   : (1, 8, 128) float32   per-tile partial sum (replicated store)
    pmix_ref  : (TR, Cp) float32      scratch accumulator for sum_s p_s
    """
    tr = logits_ref.shape[1]
    cp = logits_ref.shape[2]

    ce_part = jnp.float32(0.0)
    neg_entropy = jnp.float32(0.0)   # sum_s sum(p_s * log p_s)

    for s in range(num_splits):
        xs = logits_ref[s].astype(jnp.float32)            # (TR, Cp)
        z = xs - jnp.max(xs, axis=1, keepdims=True)
        e = jnp.exp(z)                                    # single exp per element
        sum_e = jnp.sum(e, axis=1, keepdims=True)         # (TR, 1)
        p = e * (1.0 / sum_e)                             # softmax (reuses e)
        sum_lse = jnp.sum(jnp.log(sum_e))                 # sum_rows log-sum-exp

        # sum(p * logp) == sum(p * z) - sum_rows(lse)   (since sum_c p == 1).
        # Padded lanes: z finite-but-huge-negative, p underflows to exactly 0,
        # so 0 * z == 0 and they drop out of every reduction with no mask.
        neg_entropy = neg_entropy + jnp.sum(p * z) - sum_lse

        if s == 0:
            pmix_ref[...] = p
            t = target_ref[...]                           # (TR, 1)
            col = jax.lax.broadcasted_iota(jnp.int32, (tr, cp), 1)
            # CE = -sum_rows(logp[t]) = sum_rows(lse) - sum(where(col==t, z, 0))
            ce_part = sum_lse - jnp.sum(jnp.where(col == t, z, 0.0))
        else:
            pmix_ref[...] = pmix_ref[...] + p

    inv_ns = jnp.float32(1.0 / num_splits)
    p_mix_sum = pmix_ref[...]
    # Mixture <= 1 by construction, so only the lower clamp is needed.
    logm = jnp.log(jnp.maximum(p_mix_sum * inv_ns, 1e-7))
    # sum_s sum(p_s * logm) == sum(p_mix_sum * logm)
    kl_sum = neg_entropy - jnp.sum(p_mix_sum * logm)

    partial = ce_part + jnp.float32(alpha) * inv_ns * kl_sum
    out_ref[...] = jnp.broadcast_to(partial, out_ref.shape)


def _vmem_capacity_bytes():
    """Physical VMEM per TensorCore; falls back to the smallest (v7x) if unknown."""
    try:
        return int(pltpu.get_tpu_info().vmem_capacity_bytes)
    except Exception:
        return 64 << 20


def _pick_row_tile(split_size, bytes_per_row, sublane, max_tile_bytes):
    """Largest row tile that divides split_size, is sublane-aligned, and fits budget."""
    cap = max(sublane, max_tile_bytes // max(bytes_per_row, 1))
    # Prefer >= 2 grid steps so both v7x TensorCores get work under "parallel".
    if split_size >= 2 * sublane:
        cap = min(cap, split_size // 2)
    cap = min(cap, split_size)
    tr = (cap // sublane) * sublane
    while tr >= sublane:
        if split_size % tr == 0:
            return tr
        tr -= sublane
    return split_size   # fall back: one tile spanning all rows (block == full dim)


def jsd_cross_entropy_loss(logits, target, num_splits=NUM_SPLITS, alpha=ALPHA,
                           max_tile_bytes=None):
    B, C = logits.shape
    split_size = B // num_splits
    assert split_size * num_splits == B, "batch must be divisible by num_splits"

    # Generation-aware budgets: 128 MiB parts (v5e/v6e) -> big tiles to amortize
    # per-step overhead (HBM-bound); 64 MiB parts (v7x) -> <= ~8 MiB input blocks
    # and <= ~48 MiB scoped VMEM to stay clear of the ceiling.
    vmem_cap = _vmem_capacity_bytes()
    if max_tile_bytes is None:
        max_tile_bytes = (14 << 20) if vmem_cap >= (96 << 20) else (8 << 20)
    vmem_limit_bytes = int(min(100 << 20, (vmem_cap * 3) // 4))

    # [B, C] -> [num_splits, split_size, C] (free view; classes stay on lanes).
    # No dtype cast here: the native dtype is DMA'd and cast in-kernel.
    x = logits.reshape(num_splits, split_size, C)

    # Pad the class axis to a lane-dense multiple of 128 with a large negative
    # finite fill: softmax weight underflows to exactly 0 for padded lanes, so
    # they drop out of every reduction with no in-kernel mask.
    cp = ((C + _LANE - 1) // _LANE) * _LANE
    if cp != C:
        fill = -min(1e30, float(jnp.finfo(x.dtype).max) * 0.5)
        x = jnp.pad(x, ((0, 0), (0, 0), (0, cp - C)), constant_values=fill)

    itemsize = jnp.dtype(x.dtype).itemsize
    sublane = 8 * max(1, 4 // itemsize)          # 8 (f32) / 16 (bf16) / 32 (1-byte)
    tr = _pick_row_tile(split_size, num_splits * cp * itemsize, sublane, max_tile_bytes)
    num_tiles = split_size // tr

    target2d = target[:split_size].astype(jnp.int32).reshape(split_size, 1)

    kernel = functools.partial(_jsd_ce_kernel,
                               num_splits=num_splits, alpha=float(alpha))

    partials = pl.pallas_call(
        kernel,
        out_shape=jax.ShapeDtypeStruct((num_tiles, 8, _LANE), jnp.float32),
        grid_spec=pltpu.PrefetchScalarGridSpec(
            num_scalar_prefetch=0,
            grid=(num_tiles,),
            in_specs=[
                pl.BlockSpec((num_splits, tr, cp), lambda i: (0, i, 0)),
                pl.BlockSpec((tr, 1), lambda i: (i, 0)),
            ],
            out_specs=pl.BlockSpec((1, 8, _LANE), lambda i: (i, 0, 0)),
            scratch_shapes=[pltpu.VMEM((tr, cp), jnp.float32)],
        ),
        compiler_params=pltpu.CompilerParams(
            dimension_semantics=("parallel",),          # row tiles shard across TCs
            vmem_limit_bytes=vmem_limit_bytes,
        ),
    )(x, target2d)

    # Both CE (mean) and KL (batchmean) are normalized by split_size.
    return jnp.sum(partials[:, 0, 0]) / split_size


def _reference(logits, target, num_splits=NUM_SPLITS, alpha=ALPHA):
    """Pure-JAX reference mirroring the PyTorch module."""
    B, C = logits.shape
    ss = B // num_splits
    splits = [logits[i * ss:(i + 1) * ss] for i in range(num_splits)]
    logp0 = jax.nn.log_softmax(splits[0], axis=1)
    ce = -jnp.mean(jnp.take_along_axis(logp0, target[:ss, None], axis=1))
    probs = [jax.nn.softmax(s, axis=1) for s in splits]
    logm = jnp.log(jnp.clip(jnp.mean(jnp.stack(probs), axis=0), 1e-7, 1.0))
    kl = sum(jnp.sum(p * (jnp.log(p) - logm)) / ss for p in probs)
    return ce + alpha * kl / num_splits


if __name__ == "__main__":
    key = jax.random.PRNGKey(0)
    k1, k2 = jax.random.split(key)

    split_size = 4
    B = NUM_SPLITS * split_size   # 12
    C = 8

    logits = jax.random.normal(k1, (B, C), dtype=jnp.float32)
    target = jax.random.randint(k2, (B,), 0, C, dtype=jnp.int32)

    loss = jsd_cross_entropy_loss(logits, target)
    loss = jax.block_until_ready(loss)

    ref = _reference(logits, target)
    assert jnp.isfinite(loss), "kernel produced non-finite loss"
    assert jnp.allclose(loss, ref, rtol=1e-5, atol=1e-5), (loss, ref)

    # TODO(synk): CrossEntropyLoss ignore_index / label_smoothing are not modeled
    # (the PyTorch module uses the defaults, so semantics match).
    print("KERNEL_OK")
</pallas_src>

<mosaic_0001>
module attributes {stable_mosaic.version = 11 : i64} {
  func.func @_jsd_ce_kernel(%arg0: i32, %arg1: memref<3x4x128xf32, #tpu.memory_space<vmem>>, %arg2: memref<4x1xi32, #tpu.memory_space<vmem>>, %arg3: memref<1x8x128xf32, #tpu.memory_space<vmem>>, %arg4: memref<4x128xf32, #tpu.memory_space<vmem>>) attributes {dimension_semantics = [#tpu.dimension_semantics<parallel>], iteration_bounds = array<i64: 1>, scalar_prefetch = 0 : i64, scratch_operands = 1 : i64, tpu.core_type = #tpu.core_type<tc>, window_params = [{transform_indices = @transform_0, window_bounds = array<i64: 3, 4, 128>}, {transform_indices = @transform_1, window_bounds = array<i64: 4, 1>}, {transform_indices = @transform_2, window_bounds = array<i64: 1, 8, 128>}]} {
    %c0 = arith.constant 0 : index
    %c0_0 = arith.constant 0 : index
    %c0_1 = arith.constant 0 : index
    %0 = vector.load %arg1[%c0, %c0_0, %c0_1] : memref<3x4x128xf32, #tpu.memory_space<vmem>>, vector<1x4x128xf32>
    %1 = vector.shape_cast %0 : vector<1x4x128xf32> to vector<4x128xf32>
    %cst = arith.constant dense<0xFF800000> : vector<4xf32>
    %2 = vector.multi_reduction <maximumf>, %1, %cst [1] : vector<4x128xf32> to vector<4xf32>
    %3 = vector.shape_cast %2 : vector<4xf32> to vector<4x1xf32>
    %4 = vector.broadcast %3 : vector<4x1xf32> to vector<4x128xf32>
    %5 = arith.subf %1, %4 : vector<4x128xf32>
    %6 = math.exp %5 : vector<4x128xf32>
    %cst_2 = arith.constant dense<0.000000e+00> : vector<4xf32>
    %7 = vector.multi_reduction <add>, %6, %cst_2 [1] : vector<4x128xf32> to vector<4xf32>
    %8 = vector.shape_cast %7 : vector<4xf32> to vector<4x1xf32>
    %cst_3 = arith.constant 1.000000e+00 : f32
    %9 = vector.broadcast %cst_3 : f32 to vector<4x1xf32>
    %10 = arith.divf %9, %8 : vector<4x1xf32>
    %11 = vector.broadcast %10 : vector<4x1xf32> to vector<4x128xf32>
    %12 = arith.mulf %6, %11 : vector<4x128xf32>
    %13 = math.log %8 : vector<4x1xf32>
    %14 = vector.shape_cast %13 : vector<4x1xf32> to vector<1x4x1xf32>
    %cst_4 = arith.constant dense<0.000000e+00> : vector<1xf32>
    %15 = vector.multi_reduction <add>, %14, %cst_4 [1, 2] : vector<1x4x1xf32> to vector<1xf32>
    %16 = vector.shape_cast %15 : vector<1xf32> to vector<1x1x1xf32>
    %17 = vector.extract %16[0, 0, 0] : f32 from vector<1x1x1xf32>
    %18 = arith.mulf %12, %5 : vector<4x128xf32>
    %19 = vector.shape_cast %18 : vector<4x128xf32> to vector<1x4x128xf32>
    %cst_5 = arith.constant dense<0.000000e+00> : vector<1xf32>
    %20 = vector.multi_reduction <add>, %19, %cst_5 [1, 2] : vector<1x4x128xf32> to vector<1xf32>
    %21 = vector.shape_cast %20 : vector<1xf32> to vector<1x1x1xf32>
    %22 = vector.extract %21[0, 0, 0] : f32 from vector<1x1x1xf32>
    %cst_6 = arith.constant 0.000000e+00 : f32
    %23 = arith.addf %cst_6, %22 : f32
    %24 = arith.subf %23, %17 : f32
    %c0_7 = arith.constant 0 : index
    %c0_8 = arith.constant 0 : index
    %25 = vector.load %arg4[%c0_7, %c0_8] : memref<4x128xf32, #tpu.memory_space<vmem>>, vector<4x128xf32>
    tpu.vector_store %arg4[%c0_7, %c0_8], %12 {strides = array<i32>} : memref<4x128xf32, #tpu.memory_space<vmem>>, vector<4x128xf32>,
    %c0_9 = arith.constant 0 : index
    %c0_10 = arith.constant 0 : index
    %26 = vector.load %arg2[%c0_9, %c0_10] : memref<4x1xi32, #tpu.memory_space<vmem>>, vector<4x1xi32>
    %27 = tpu.iota {dimensions = array<i32: 1>} : vector<4x128xi32>
    %28 = vector.broadcast %26 : vector<4x1xi32> to vector<4x128xi32>
    %29 = arith.cmpi eq, %27, %28 : vector<4x128xi32>
    %cst_11 = arith.constant 0.000000e+00 : f32
    %30 = vector.broadcast %cst_11 : f32 to vector<4x128xf32>
    %31 = arith.select %29, %5, %30 : vector<4x128xi1>, vector<4x128xf32>
    %32 = vector.shape_cast %31 : vector<4x128xf32> to vector<1x4x128xf32>
    %cst_12 = arith.constant dense<0.000000e+00> : vector<1xf32>
    %33 = vector.multi_reduction <add>, %32, %cst_12 [1, 2] : vector<1x4x128xf32> to vector<1xf32>
    %34 = vector.shape_cast %33 : vector<1xf32> to vector<1x1x1xf32>
    %35 = vector.extract %34[0, 0, 0] : f32 from vector<1x1x1xf32>
    %36 = arith.subf %17, %35 : f32
    %c1 = arith.constant 1 : index
    %c0_13 = arith.constant 0 : index
    %c0_14 = arith.constant 0 : index
    %37 = vector.load %arg1[%c1, %c0_13, %c0_14] : memref<3x4x128xf32, #tpu.memory_space<vmem>>, vector<1x4x128xf32>
    %38 = vector.shape_cast %37 : vector<1x4x128xf32> to vector<4x128xf32>
    %cst_15 = arith.constant dense<0xFF800000> : vector<4xf32>
    %39 = vector.multi_reduction <maximumf>, %38, %cst_15 [1] : vector<4x128xf32> to vector<4xf32>
    %40 = vector.shape_cast %39 : vector<4xf32> to vector<4x1xf32>
    %41 = vector.broadcast %40 : vector<4x1xf32> to vector<4x128xf32>
    %42 = arith.subf %38, %41 : vector<4x128xf32>
    %43 = math.exp %42 : vector<4x128xf32>
    %cst_16 = arith.constant dense<0.000000e+00> : vector<4xf32>
    %44 = vector.multi_reduction <add>, %43, %cst_16 [1] : vector<4x128xf32> to vector<4xf32>
    %45 = vector.shape_cast %44 : vector<4xf32> to vector<4x1xf32>
    %cst_17 = arith.constant 1.000000e+00 : f32
    %46 = vector.broadcast %cst_17 : f32 to vector<4x1xf32>
    %47 = arith.divf %46, %45 : vector<4x1xf32>
    %48 = vector.broadcast %47 : vector<4x1xf32> to vector<4x128xf32>
    %49 = arith.mulf %43, %48 : vector<4x128xf32>
    %50 = math.log %45 : vector<4x1xf32>
    %51 = vector.shape_cast %50 : vector<4x1xf32> to vector<1x4x1xf32>
    %cst_18 = arith.constant dense<0.000000e+00> : vector<1xf32>
    %52 = vector.multi_reduction <add>, %51, %cst_18 [1, 2] : vector<1x4x1xf32> to vector<1xf32>
    %53 = vector.shape_cast %52 : vector<1xf32> to vector<1x1x1xf32>
    %54 = vector.extract %53[0, 0, 0] : f32 from vector<1x1x1xf32>
    %55 = arith.mulf %49, %42 : vector<4x128xf32>
    %56 = vector.shape_cast %55 : vector<4x128xf32> to vector<1x4x128xf32>
    %cst_19 = arith.constant dense<0.000000e+00> : vector<1xf32>
    %57 = vector.multi_reduction <add>, %56, %cst_19 [1, 2] : vector<1x4x128xf32> to vector<1xf32>
    %58 = vector.shape_cast %57 : vector<1xf32> to vector<1x1x1xf32>
    %59 = vector.extract %58[0, 0, 0] : f32 from vector<1x1x1xf32>
    %60 = arith.addf %24, %59 : f32
    %61 = arith.subf %60, %54 : f32
    %c0_20 = arith.constant 0 : index
    %c0_21 = arith.constant 0 : index
    %62 = vector.load %arg4[%c0_20, %c0_21] : memref<4x128xf32, #tpu.memory_space<vmem>>, vector<4x128xf32>
    %63 = arith.addf %62, %49 : vector<4x128xf32>
    %c0_22 = arith.constant 0 : index
    %c0_23 = arith.constant 0 : index
    %64 = vector.load %arg4[%c0_22, %c0_23] : memref<4x128xf32, #tpu.memory_space<vmem>>, vector<4x128xf32>
    tpu.vector_store %arg4[%c0_22, %c0_23], %63 {strides = array<i32>} : memref<4x128xf32, #tpu.memory_space<vmem>>, vector<4x128xf32>,
    %c2 = arith.constant 2 : index
    %c0_24 = arith.constant 0 : index
    %c0_25 = arith.constant 0 : index
    %65 = vector.load %arg1[%c2, %c0_24, %c0_25] : memref<3x4x128xf32, #tpu.memory_space<vmem>>, vector<1x4x128xf32>
    %66 = vector.shape_cast %65 : vector<1x4x128xf32> to vector<4x128xf32>
    %cst_26 = arith.constant dense<0xFF800000> : vector<4xf32>
    %67 = vector.multi_reduction <maximumf>, %66, %cst_26 [1] : vector<4x128xf32> to vector<4xf32>
    %68 = vector.shape_cast %67 : vector<4xf32> to vector<4x1xf32>
    %69 = vector.broadcast %68 : vector<4x1xf32> to vector<4x128xf32>
    %70 = arith.subf %66, %69 : vector<4x128xf32>
    %71 = math.exp %70 : vector<4x128xf32>
    %cst_27 = arith.constant dense<0.000000e+00> : vector<4xf32>
    %72 = vector.multi_reduction <add>, %71, %cst_27 [1] : vector<4x128xf32> to vector<4xf32>
    %73 = vector.shape_cast %72 : vector<4xf32> to vector<4x1xf32>
    %cst_28 = arith.constant 1.000000e+00 : f32
    %74 = vector.broadcast %cst_28 : f32 to vector<4x1xf32>
    %75 = arith.divf %74, %73 : vector<4x1xf32>
    %76 = vector.broadcast %75 : vector<4x1xf32> to vector<4x128xf32>
    %77 = arith.mulf %71, %76 : vector<4x128xf32>
    %78 = math.log %73 : vector<4x1xf32>
    %79 = vector.shape_cast %78 : vector<4x1xf32> to vector<1x4x1xf32>
    %cst_29 = arith.constant dense<0.000000e+00> : vector<1xf32>
    %80 = vector.multi_reduction <add>, %79, %cst_29 [1, 2] : vector<1x4x1xf32> to vector<1xf32>
    %81 = vector.shape_cast %80 : vector<1xf32> to vector<1x1x1xf32>
    %82 = vector.extract %81[0, 0, 0] : f32 from vector<1x1x1xf32>
    %83 = arith.mulf %77, %70 : vector<4x128xf32>
    %84 = vector.shape_cast %83 : vector<4x128xf32> to vector<1x4x128xf32>
    %cst_30 = arith.constant dense<0.000000e+00> : vector<1xf32>
    %85 = vector.multi_reduction <add>, %84, %cst_30 [1, 2] : vector<1x4x128xf32> to vector<1xf32>
    %86 = vector.shape_cast %85 : vector<1xf32> to vector<1x1x1xf32>
    %87 = vector.extract %86[0, 0, 0] : f32 from vector<1x1x1xf32>
    %88 = arith.addf %61, %87 : f32
    %89 = arith.subf %88, %82 : f32
    %c0_31 = arith.constant 0 : index
    %c0_32 = arith.constant 0 : index
    %90 = vector.load %arg4[%c0_31, %c0_32] : memref<4x128xf32, #tpu.memory_space<vmem>>, vector<4x128xf32>
    %91 = arith.addf %90, %77 : vector<4x128xf32>
    %c0_33 = arith.constant 0 : index
    %c0_34 = arith.constant 0 : index
    %92 = vector.load %arg4[%c0_33, %c0_34] : memref<4x128xf32, #tpu.memory_space<vmem>>, vector<4x128xf32>
    tpu.vector_store %arg4[%c0_33, %c0_34], %91 {strides = array<i32>} : memref<4x128xf32, #tpu.memory_space<vmem>>, vector<4x128xf32>,
    %c0_35 = arith.constant 0 : index
    %c0_36 = arith.constant 0 : index
    %93 = vector.load %arg4[%c0_35, %c0_36] : memref<4x128xf32, #tpu.memory_space<vmem>>, vector<4x128xf32>
    %cst_37 = arith.constant 0.333333343 : f32
    %94 = vector.broadcast %cst_37 : f32 to vector<4x128xf32>
    %95 = arith.mulf %93, %94 : vector<4x128xf32>
    %cst_38 = arith.constant 1.000000e-07 : f32
    %96 = vector.broadcast %cst_38 : f32 to vector<4x128xf32>
    %97 = arith.maximumf %95, %96 : vector<4x128xf32>
    %98 = math.log %97 : vector<4x128xf32>
    %99 = arith.mulf %93, %98 : vector<4x128xf32>
    %100 = vector.shape_cast %99 : vector<4x128xf32> to vector<1x4x128xf32>
    %cst_39 = arith.constant dense<0.000000e+00> : vector<1xf32>
    %101 = vector.multi_reduction <add>, %100, %cst_39 [1, 2] : vector<1x4x128xf32> to vector<1xf32>
    %102 = vector.shape_cast %101 : vector<1xf32> to vector<1x1x1xf32>
    %103 = vector.extract %102[0, 0, 0] : f32 from vector<1x1x1xf32>
    %104 = arith.subf %89, %103 : f32
    %cst_40 = arith.constant 1.200000e+01 : f32
    %cst_41 = arith.constant 0.333333343 : f32
    %105 = arith.mulf %cst_40, %cst_41 : f32
    %106 = arith.mulf %105, %104 : f32
    %107 = arith.addf %36, %106 : f32
    %108 = vector.broadcast %107 : f32 to vector<1x8x128xf32>
    %c0_42 = arith.constant 0 : index
    %c0_43 = arith.constant 0 : index
    %c0_44 = arith.constant 0 : index
    %109 = vector.load %arg3[%c0_42, %c0_43, %c0_44] : memref<1x8x128xf32, #tpu.memory_space<vmem>>, vector<1x8x128xf32>
    tpu.vector_store %arg3[%c0_42, %c0_43, %c0_44], %108 {strides = array<i32>} : memref<1x8x128xf32, #tpu.memory_space<vmem>>, vector<1x8x128xf32>,
    return
  }
  func.func @transform_0(%arg0: i32) -> (i32, i32, i32) {
    %c0_i32 = arith.constant 0 : i32
    %c0_i32_0 = arith.constant 0 : i32
    %c0_i32_1 = arith.constant 0 : i32
    return %c0_i32, %arg0, %c0_i32_0 : i32, i32, i32
  }
  func.func @transform_1(%arg0: i32) -> (i32, i32) {
    %c0_i32 = arith.constant 0 : i32
    %c0_i32_0 = arith.constant 0 : i32
    return %arg0, %c0_i32 : i32, i32
  }
  func.func @transform_2(%arg0: i32) -> (i32, i32, i32) {
    %c0_i32 = arith.constant 0 : i32
    %c0_i32_0 = arith.constant 0 : i32
    %c0_i32_1 = arith.constant 0 : i32
    return %arg0, %c0_i32, %c0_i32_0 : i32, i32, i32
  }
}

</mosaic_0001>

<llo_original>
// kernel: tpu_custom_call.1
$region0: #{tpu_custom_call.1}
  #allocation0 [shape = 'u32[]', space=smem, size = 0x4, offset = 0x4, fixed_abs, tag = 'smem constant byte address 0x4 - core index']
  #allocation1 [shape = 'u32[144,128]{1,0:T(1,128)}', space=vmem, size = 0x12000, scoped, tag = 'internal scratch']
  #allocation2 [shape = 'f32[4,128]{1,0:T(4,128)}', space=vmem, size = 0x800, scoped, tag = 'scratch operand']
  %s0 = inlined_call_operand.hbm [shape: f32[3,4,128], index: 0, kind: input, shape index: {}]
  %s1 = inlined_call_operand.vmem [shape: s32[4,1], index: 1, kind: input, shape index: {}]
  %s2 = inlined_call_operand.hbm [shape: f32[1,8,128], index: 2, kind: output, shape index: {}]
  %s3 = sld [smem:[#allocation0]]
  $region22: #{tpu_custom_call.1} parent=0
    _
  %s5 = ssub.s32 1, %s3
  %s6 = scalar_select 0, %s5, %s3
  $region1: #{tpu_custom_call.1} parent=0
    #allocation3 [shape = 'u8[6144]{0}', space=vmem, size = 0x1800, scoped, tag = 'input window, operand 0, single buffered']
    #allocation4 [shape = 's32[1]{0}', space=sflag, size = 0x4, scoped, tag = 'scoped memory for tpu_custom_call.1']
    #allocation5 [shape = 's32[1]{0}', space=sflag, size = 0x4, scoped, tag = 'scoped memory for tpu_custom_call.1']
    #allocation6 [shape = 'u8[4096]{0}', space=vmem, size = 0x1000, scoped, tag = 'output window, operand 0, single buffered']
    %7 = vsyncpa [#allocation4], 0
    %8 = vsyncpa [#allocation5], 0
    // Predicated region
    $region2: #{tpu_custom_call.1} parent=1 // pred_check
      _
    $region3: #{tpu_custom_call.1} parent=1 // pred_check_branch
      %10 = sbr.rel (0) target = $region5
    $region4: #{tpu_custom_call.1} parent=1 // pred_region
      %s12 = ssub.s32 192, 192
      %13 = vsyncadd [#allocation4], %s12
      %s14 = sshll.u32 [#allocation3], 4
      %s15 = int_to_ptr.vmem [resolvable:$true] %s14
      %20 = dma.hbm_to_vmem [thread:$0]  %s0, 192, %s15, [#allocation4], 64, 64, 4
    $region5: #{tpu_custom_call.1} parent=1 // pred_fallthru
      _
    // Predicated region
    $region6: #{tpu_custom_call.1} parent=1 // pred_check
      _
    $region7: #{tpu_custom_call.1} parent=1 // pred_check_branch
      %22 = sbr.rel (0) target = $region9
    $region8: #{tpu_custom_call.1} parent=1 // pred_region
      _
    $region9: #{tpu_custom_call.1} parent=1 // pred_fallthru
      _
    // Predicated region
    $region10: #{tpu_custom_call.1} parent=1 // pred_check
      _
    $region11: #{tpu_custom_call.1} parent=1 // pred_check_branch
      %24 = sbr.rel (0) target = $region13
    $region12: #{tpu_custom_call.1} parent=1 // pred_region
      %25 = dma.done [#allocation4], 192
    $region13: #{tpu_custom_call.1} parent=1 // pred_fallthru
      _
    %v26 = vld [vmem:[#allocation3] sm:$0xf]
    %vm27 = vcmask 1043456
    %v28 = vsel %vm27, %v26, -inf
    %29 = vmax.xlane.f32.xlu0 %v28
    %v30 = vpop.xlane.xlu0 %29
    %v31 = vsub.f32 %v26, %v30
    %v32 = vmul.f32 %v31, 1.442695
    %v33 = vpow.pop %v32
    %v34 = vsel %vm27, %v33, 0.0
    %35 = vadd.xlane.f32.xlu0 %v34
    %v36 = vpop.xlane.xlu0 %35
    %v37 = vrcp.pop %v36
    %v38 = vmul.f32 1.0, %v37
    %v39 = vmul.f32 %v33, %v38
    %v40 = vlog2.pop %v36
    %v41 = vmul.f32 %v40, 0.6931472
    %vm42 = vcmask 3072
    %v43 = vsel %vm42, %v41, 0.0
    %44 = vadd.xlane.f32.xlu0 %v43
    %v45 = vpop.xlane.xlu0 %44
    %v46 = vrot.slane %v45, 4
    %v47 = vadd.f32 %v45, %v46
    %v48 = vrot.slane %v47, 2
    %v49 = vadd.f32 %v47, %v48
    %v50 = vrot.slane %v49, 1
    %v51 = vadd.f32 %v49, %v50
    %s52 = vtos %v51
    %v53 = vmul.f32 %v39, %v31
    %v54 = vsel %vm27, %v53, 0.0
    %55 = vadd.xlane.f32.xlu0 %v54
    %v56 = vpop.xlane.xlu0 %55
    %v57 = vrot.slane %v56, 4
    %v58 = vadd.f32 %v56, %v57
    %v59 = vrot.slane %v58, 2
    %v60 = vadd.f32 %v58, %v59
    %v61 = vrot.slane %v60, 1
    %v62 = vadd.f32 %v60, %v61
    %s63 = vtos %v62
    %s64 = sadd.f32 %s63, 0.0
    %s65 = ssub.f32 %s64, %s52
    %66 = vst [vmem:[#allocation2] sm:$0xf] %v39
    %v67 = vld [vmem:[%s1] sm:$0xf]
    %v68 = vlaneseq
    %v69 = vand.u32 %v68, 127
    %70 = vset.pattern.permute.xlu0 0
    %71 = vperm.xlu0 %70, %v67
    %v72 = vpop.permute.xlu0 %71
    %vm73 = vcmp.eq.s32.totalorder %v69, %v72
    %v74 = vsel %vm73, %v31, 0.0
    %v75 = vsel %vm27, %v74, 0.0
    %76 = vadd.xlane.f32.xlu0 %v75
    %v77 = vpop.xlane.xlu0 %76
    %v78 = vrot.slane %v77, 4
    %v79 = vadd.f32 %v77, %v78
    %v80 = vrot.slane %v79, 2
    %v81 = vadd.f32 %v79, %v80
    %v82 = vrot.slane %v81, 1
    %v83 = vadd.f32 %v81, %v82
    %s84 = vtos %v83
    %s85 = ssub.f32 %s52, %s84
    %s86 = scalar_lea.vmem [#allocation3], 4
    %v87 = vld [vmem:[%s86] sm:$0xf]
    %v88 = vsel %vm27, %v87, -inf
    %89 = vmax.xlane.f32.xlu0 %v88
    %v90 = vpop.xlane.xlu0 %89
    %v91 = vsub.f32 %v87, %v90
    %v92 = vmul.f32 %v91, 1.442695
    %v93 = vpow.pop %v92
    %v94 = vsel %vm27, %v93, 0.0
    %95 = vadd.xlane.f32.xlu0 %v94
    %v96 = vpop.xlane.xlu0 %95
    %v97 = vrcp.pop %v96
    %v98 = vmul.f32 1.0, %v97
    %v99 = vmul.f32 %v93, %v98
    %v100 = vlog2.pop %v96
    %v101 = vmul.f32 %v100, 0.6931472
    %v102 = vsel %vm42, %v101, 0.0
    %103 = vadd.xlane.f32.xlu0 %v102
    %v104 = vpop.xlane.xlu0 %103
    %v105 = vrot.slane %v104, 4
    %v106 = vadd.f32 %v104, %v105
    %v107 = vrot.slane %v106, 2
    %v108 = vadd.f32 %v106, %v107
    %v109 = vrot.slane %v108, 1
    %v110 = vadd.f32 %v108, %v109
    %s111 = vtos %v110
    %v112 = vmul.f32 %v99, %v91
    %v113 = vsel %vm27, %v112, 0.0
    %114 = vadd.xlane.f32.xlu0 %v113
    %v115 = vpop.xlane.xlu0 %114
    %v116 = vrot.slane %v115, 4
    %v117 = vadd.f32 %v115, %v116
    %v118 = vrot.slane %v117, 2
    %v119 = vadd.f32 %v117, %v118
    %v120 = vrot.slane %v119, 1
    %v121 = vadd.f32 %v119, %v120
    %s122 = vtos %v121
    %s123 = sadd.f32 %s65, %s122
    %s124 = ssub.f32 %s123, %s111
    %v125 = vld [vmem:[#allocation2] sm:$0xf]
    %v126 = vadd.f32 %v125, %v99
    %127 = vst [vmem:[#allocation2] sm:$0xf] %v126
    %s128 = scalar_lea.vmem [#allocation3], 8
    %v129 = vld [vmem:[%s128] sm:$0xf]
    %v130 = vsel %vm27, %v129, -inf
    %131 = vmax.xlane.f32.xlu0 %v130
    %v132 = vpop.xlane.xlu0 %131
    %v133 = vsub.f32 %v129, %v132
    %v134 = vmul.f32 %v133, 1.442695
    %v135 = vpow.pop %v134
    %v136 = vsel %vm27, %v135, 0.0
    %137 = vadd.xlane.f32.xlu0 %v136
    %v138 = vpop.xlane.xlu0 %137
    %v139 = vrcp.pop %v138
    %v140 = vmul.f32 1.0, %v139
    %v141 = vmul.f32 %v135, %v140
    %v142 = vlog2.pop %v138
    %v143 = vmul.f32 %v142, 0.6931472
    %v144 = vsel %vm42, %v143, 0.0
    %145 = vadd.xlane.f32.xlu0 %v144
    %v146 = vpop.xlane.xlu0 %145
    %v147 = vrot.slane %v146, 4
    %v148 = vadd.f32 %v146, %v147
    %v149 = vrot.slane %v148, 2
    %v150 = vadd.f32 %v148, %v149
    %v151 = vrot.slane %v150, 1
    %v152 = vadd.f32 %v150, %v151
    %s153 = vtos %v152
    %v154 = vmul.f32 %v141, %v133
    %v155 = vsel %vm27, %v154, 0.0
    %156 = vadd.xlane.f32.xlu0 %v155
    %v157 = vpop.xlane.xlu0 %156
    %v158 = vrot.slane %v157, 4
    %v159 = vadd.f32 %v157, %v158
    %v160 = vrot.slane %v159, 2
    %v161 = vadd.f32 %v159, %v160
    %v162 = vrot.slane %v161, 1
    %v163 = vadd.f32 %v161, %v162
    %s164 = vtos %v163
    %s165 = sadd.f32 %s124, %s164
    %s166 = ssub.f32 %s165, %s153
    %v167 = vld [vmem:[#allocation2] sm:$0xf]
    %v168 = vadd.f32 %v167, %v141
    %169 = vst [vmem:[#allocation2] sm:$0xf] %v168
    %v170 = vld [vmem:[#allocation2] sm:$0xf]
    %v171 = vmul.f32 %v170, 0.33333334
    %v172 = vmax.f32 %v171, 1e-07
    %v173 = vlog2.pop %v172
    %v174 = vmul.f32 %v173, 0.6931472
    %v175 = vmul.f32 %v170, %v174
    %v176 = vsel %vm27, %v175, 0.0
    %177 = vadd.xlane.f32.xlu0 %v176
    %v178 = vpop.xlane.xlu0 %177
    %v179 = vrot.slane %v178, 4
    %v180 = vadd.f32 %v178, %v179
    %v181 = vrot.slane %v180, 2
    %v182 = vadd.f32 %v180, %v181
    %v183 = vrot.slane %v182, 1
    %v184 = vadd.f32 %v182, %v183
    %s185 = vtos %v184
    %s186 = ssub.f32 %s166, %s185
    %s187 = smul.f32 %s186, 4.0
    %s188 = sadd.f32 %s85, %s187
    %v189 = vstv %s188
    %190 = vst [vmem:[#allocation6] sm:$0xff] %v189
    // Predicated region
    $region14: #{tpu_custom_call.1} parent=1 // pred_check
      _
    $region15: #{tpu_custom_call.1} parent=1 // pred_check_branch
      %192 = sbr.rel (0) target = $region17
    $region16: #{tpu_custom_call.1} parent=1 // pred_region
      %s194 = ssub.s32 128, 128
      %195 = vsyncadd [#allocation5], %s194
      %s197 = sshll.u32 [#allocation6], 4
      %s198 = int_to_ptr.vmem [resolvable:$true] %s197
      %200 = dma.vmem_to_hbm [thread:$0]  %s198, 128, %s2, [#allocation5]
    $region17: #{tpu_custom_call.1} parent=1 // pred_fallthru
      _
    // Predicated region
    $region18: #{tpu_custom_call.1} parent=1 // pred_check
      _
    $region19: #{tpu_custom_call.1} parent=1 // pred_check_branch
      %202 = sbr.rel (0) target = $region21
    $region20: #{tpu_custom_call.1} parent=1 // pred_region
      %203 = dma.done [#allocation5], 128
    $region21: #{tpu_custom_call.1} parent=1 // pred_fallthru
      _
    %204 = vsyncpa [#allocation4], 1
    %205 = vsyncpa [#allocation5], 1

</llo_original>
